<compile_context>
chip_gen: v6e
topology: v6e:2x2x1
jax: 0.10.0
libtpu: 0.0.40
codegen_flags: <defaults>
</compile_context>

<pallas_src>
import jax
import jax.numpy as jnp
from jax.experimental import pallas as pl
from jax.experimental.pallas import tpu as pltpu


def _round_up(x, m):
    return ((x + m - 1) // m) * m


def _pick_batch_tile(B, max_tb=8):
    """Largest tile <= max_tb that divides B and is 8-aligned (or the full B)."""
    if B <= max_tb:
        return B
    t = max_tb - (max_tb % 8)
    while t >= 8:
        if B % t == 0:
            return t
        t -= 8
    return B


def _pick_seq_tile(S, tB, E, max_block_bytes=4 * 1024 * 1024):
    """Largest S tile that divides S, is 8-aligned, and keeps one f32 input
    block [tB, tS, E] under max_block_bytes (double-buffering is accounted for
    in the VMEM-limit calculation)."""
    target = max(8, max_block_bytes // max(1, tB * E * 4))
    if S <= target:
        return S
    t = (min(target, S) // 8) * 8
    while t >= 8:
        if S % t == 0:
            return t
        t -= 8
    # TODO(synk): ragged S tails are not masked; fall back to the full S axis.
    return S


def net_trans_kernel(x_ref, w_ref, b_ref, o_ref, max_acc):
    # x_ref:   [tB, tS, E]   one sequence's block (sequence id = grid axis 1)
    # w_ref:   [E, T_pad]    weight slice for this sequence id
    # b_ref:   [1, T_pad]    bias (resident, constant index_map)
    # o_ref:   [tB, T_pad]   resident accumulator across grid axes 1 (seq) and 2 (S)
    # max_acc: [tB, E]       running max over the S axis
    q = pl.program_id(1)
    s = pl.program_id(2)

    @pl.when(s == 0)
    def _init():
        max_acc[...] = jnp.full_like(max_acc, -jnp.inf)

    max_acc[...] = jnp.maximum(max_acc[...], jnp.max(x_ref[...], axis=1))

    @pl.when(s == pl.num_programs(2) - 1)
    def _finalize():
        partial = jnp.dot(max_acc[...], w_ref[...],
                          preferred_element_type=jnp.float32)

        @pl.when(q == 0)
        def _first():
            o_ref[...] = partial + b_ref[...]

        @pl.when(q > 0)
        def _rest():
            o_ref[...] = o_ref[...] + partial


@jax.jit
def net_trans_forward(x_stacked, w, b):
    """x_stacked: [3, B, S, E] f32, w: [3*E, T] f32, b: [1, T] f32 -> [B, T]."""
    three, B, S, E = x_stacked.shape
    assert three == 3
    T = w.shape[1]
    assert w.shape[0] == 3 * E

    # Pad the tagset axis up to a lane-dense multiple of 128.
    T_pad = _round_up(max(T, 128), 128)
    w3 = w.reshape(3, E, T)
    if T_pad != T:
        w3 = jnp.pad(w3, ((0, 0), (0, 0), (0, T_pad - T)))
        b2 = jnp.pad(b, ((0, 0), (0, T_pad - T)))
    else:
        b2 = b

    tB = _pick_batch_tile(B)
    tS = _pick_seq_tile(S, tB, E)
    grid = (B // tB, 3, S // tS)

    x_spec = pl.BlockSpec((pl.Squeezed(), tB, tS, E),
                          lambda bi, q, s: (q, bi, s, 0))
    w_spec = pl.BlockSpec((pl.Squeezed(), E, T_pad),
                          lambda bi, q, s: (q, 0, 0))
    b_spec = pl.BlockSpec((1, T_pad), lambda bi, q, s: (0, 0))
    o_spec = pl.BlockSpec((tB, T_pad), lambda bi, q, s: (bi, 0))

    # Double-buffered block footprint + scratch, with 2x headroom; keeps us
    # well within v7x's 64 MiB VMEM while exceeding the default scoped limit
    # only when actually needed.
    need = (2 * tB * tS * E * 4        # input block (double-buffered)
            + 2 * E * T_pad * 4        # weight slice
            + 2 * T_pad * 4            # bias
            + 2 * tB * T_pad * 4       # output block
            + tB * E * 4)              # running-max scratch
    vmem_limit = int(min(max(2 * need, 16 * 1024 * 1024), 48 * 1024 * 1024))

    out_pad = pl.pallas_call(
        net_trans_kernel,
        out_shape=jax.ShapeDtypeStruct((B, T_pad), jnp.float32),
        grid_spec=pltpu.PrefetchScalarGridSpec(
            num_scalar_prefetch=0,
            grid=grid,
            in_specs=[x_spec, w_spec, b_spec],
            out_specs=o_spec,
            scratch_shapes=[pltpu.VMEM((tB, E), jnp.float32)],
        ),
        compiler_params=pltpu.CompilerParams(
            dimension_semantics=("parallel", "arbitrary", "arbitrary"),
            vmem_limit_bytes=vmem_limit,
        ),
    )(x_stacked, w3, b2)
    return out_pad[:, :T]


class NetTransPallas:
    """Parameter container + forward glue mirroring NetTrans.__init__/forward."""

    def __init__(self, embedding_dim, tagset_size, batch_size, vocab_size, key):
        self.embedding_dim = embedding_dim
        self.tagset_size = tagset_size
        self.batch_size = batch_size
        k_emb, k_w, k_b = jax.random.split(key, 3)
        # TODO(synk): pretrained 'bert-base-chinese' encoder replaced by a
        # deterministic embedding lookup producing the same [B, S, E] output.
        self.embed_table = jax.random.normal(
            k_emb, (vocab_size, embedding_dim), dtype=jnp.float32) * 0.02
        # hidden2tag: Linear(embedding_dim * 3, tagset_size); stored input-major
        # so the kernel computes pooled @ W + b (== x @ W.T + b in torch).
        self.w = jax.random.normal(
            k_w, (embedding_dim * 3, tagset_size), dtype=jnp.float32) * 0.02
        self.b = jax.random.normal(k_b, (1, tagset_size), dtype=jnp.float32) * 0.02

    def _encode(self, stacked_ids):
        # Embedding-lookup stand-in for the BERT sequence output, [3, B, S, E].
        # TODO(synk): the >512-token sliding-window chunking branch and dropout
        # (identity in eval mode) are omitted.
        return jnp.take(self.embed_table, stacked_ids, axis=0)

    def __call__(self, input_ids1, input_ids2, input_ids3):
        ids = jnp.stack([input_ids1, input_ids2, input_ids3], axis=0)  # [3,B,S]
        x = self._encode(ids)                                          # [3,B,S,E]
        return net_trans_forward(x, self.w, self.b)


def _reference(model, ids1, ids2, ids3):
    """Plain-JAX reference of the same math, for a sanity check."""
    ids = jnp.stack([ids1, ids2, ids3], axis=0)
    x = model._encode(ids)                                  # [3, B, S, E]
    pooled = jnp.concatenate([x[i].max(axis=1) for i in range(3)], axis=1)
    return pooled @ model.w + model.b


if __name__ == "__main__":
    B, S, E, T, V = 2, 8, 32, 16, 64
    key = jax.random.PRNGKey(0)
    k_model, k1, k2, k3 = jax.random.split(key, 4)

    model = NetTransPallas(embedding_dim=E, tagset_size=T, batch_size=B,
                           vocab_size=V, key=k_model)

    input_ids1 = jax.random.randint(k1, (B, S), 0, V, dtype=jnp.int32)
    input_ids2 = jax.random.randint(k2, (B, S), 0, V, dtype=jnp.int32)
    input_ids3 = jax.random.randint(k3, (B, S), 0, V, dtype=jnp.int32)

    logits = jax.block_until_ready(model(input_ids1, input_ids2, input_ids3))

    ref = _reference(model, input_ids1, input_ids2, input_ids3)
    assert logits.shape == (B, T)
    assert jnp.allclose(logits, ref, atol=1e-5, rtol=1e-5), (
        float(jnp.max(jnp.abs(logits - ref))))

    print("KERNEL_OK")
</pallas_src>

<mosaic_0001>
module attributes {stable_mosaic.version = 11 : i64} {
  func.func @net_trans_kernel(%arg0: i32, %arg1: i32, %arg2: i32, %arg3: memref<1x2x8x32xf32, #tpu.memory_space<vmem>>, %arg4: memref<1x32x128xf32, #tpu.memory_space<vmem>>, %arg5: memref<1x128xf32, #tpu.memory_space<vmem>>, %arg6: memref<2x128xf32, #tpu.memory_space<vmem>>, %arg7: memref<2x32xf32, #tpu.memory_space<vmem>>) attributes {dimension_semantics = [#tpu.dimension_semantics<parallel>, #tpu.dimension_semantics<arbitrary>, #tpu.dimension_semantics<arbitrary>], iteration_bounds = array<i64: 1, 3, 1>, scalar_prefetch = 0 : i64, scratch_operands = 1 : i64, tpu.core_type = #tpu.core_type<tc>, window_params = [{transform_indices = @transform_0, window_bounds = array<i64: 1, 2, 8, 32>}, {transform_indices = @transform_1, window_bounds = array<i64: 1, 32, 128>}, {pipeline_mode = #tpu.pipeline_mode<synchronous>, transform_indices = @transform_2, window_bounds = array<i64: 1, 128>}, {transform_indices = @transform_3, window_bounds = array<i64: 2, 128>}]} {
    %c0_i32 = arith.constant 0 : i32
    %0 = arith.cmpi eq, %arg2, %c0_i32 : i32
    %1 = arith.extui %0 : i1 to i32
    %c0_i32_0 = arith.constant 0 : i32
    %2 = arith.cmpi ne, %1, %c0_i32_0 : i32
    scf.if %2 {
      %cst_10 = arith.constant 0xFF800000 : f32
      %12 = vector.broadcast %cst_10 : f32 to vector<2x32xf32>
      %c0_11 = arith.constant 0 : index
      %c0_12 = arith.constant 0 : index
      %13 = vector.load %arg7[%c0_11, %c0_12] : memref<2x32xf32, #tpu.memory_space<vmem>>, vector<2x32xf32>
      tpu.vector_store %arg7[%c0_11, %c0_12], %12 {strides = array<i32>} : memref<2x32xf32, #tpu.memory_space<vmem>>, vector<2x32xf32>,
    } else {
    }
    %c0 = arith.constant 0 : index
    %c0_1 = arith.constant 0 : index
    %3 = vector.load %arg7[%c0, %c0_1] : memref<2x32xf32, #tpu.memory_space<vmem>>, vector<2x32xf32>
    %c0_2 = arith.constant 0 : index
    %c0_3 = arith.constant 0 : index
    %c0_4 = arith.constant 0 : index
    %c0_5 = arith.constant 0 : index
    %4 = vector.load %arg3[%c0_2, %c0_3, %c0_4, %c0_5] : memref<1x2x8x32xf32, #tpu.memory_space<vmem>>, vector<1x2x8x32xf32>
    %5 = vector.shape_cast %4 : vector<1x2x8x32xf32> to vector<2x8x32xf32>
    %cst = arith.constant dense<0xFF800000> : vector<2x32xf32>
    %6 = vector.multi_reduction <maximumf>, %5, %cst [1] : vector<2x8x32xf32> to vector<2x32xf32>
    %7 = arith.maximumf %3, %6 : vector<2x32xf32>
    %c0_6 = arith.constant 0 : index
    %c0_7 = arith.constant 0 : index
    %8 = vector.load %arg7[%c0_6, %c0_7] : memref<2x32xf32, #tpu.memory_space<vmem>>, vector<2x32xf32>
    tpu.vector_store %arg7[%c0_6, %c0_7], %7 {strides = array<i32>} : memref<2x32xf32, #tpu.memory_space<vmem>>, vector<2x32xf32>,
    %c0_i32_8 = arith.constant 0 : i32
    %9 = arith.cmpi eq, %arg2, %c0_i32_8 : i32
    %10 = arith.extui %9 : i1 to i32
    %c0_i32_9 = arith.constant 0 : i32
    %11 = arith.cmpi ne, %10, %c0_i32_9 : i32
    scf.if %11 {
      %c0_10 = arith.constant 0 : index
      %c0_11 = arith.constant 0 : index
      %12 = vector.load %arg7[%c0_10, %c0_11] : memref<2x32xf32, #tpu.memory_space<vmem>>, vector<2x32xf32>
      %c0_12 = arith.constant 0 : index
      %c0_13 = arith.constant 0 : index
      %c0_14 = arith.constant 0 : index
      %13 = vector.load %arg4[%c0_12, %c0_13, %c0_14] : memref<1x32x128xf32, #tpu.memory_space<vmem>>, vector<1x32x128xf32>
      %14 = vector.shape_cast %13 : vector<1x32x128xf32> to vector<32x128xf32>
      %cst_15 = arith.constant dense<0.000000e+00> : vector<2x128xf32>
      %15 = tpu.matmul %12, %14, %cst_15 {dimension_numbers = #tpu.dot_dimension_numbers<[1], [0], [0], [1], [0, 0, 1, 1], [], []>} : vector<2x32xf32>, vector<32x128xf32>, vector<2x128xf32> -> vector<2x128xf32>
      %c0_i32_16 = arith.constant 0 : i32
      %16 = arith.cmpi eq, %arg1, %c0_i32_16 : i32
      %17 = arith.extui %16 : i1 to i32
      %c0_i32_17 = arith.constant 0 : i32
      %18 = arith.cmpi ne, %17, %c0_i32_17 : i32
      scf.if %18 {
        %c0_20 = arith.constant 0 : index
        %c0_21 = arith.constant 0 : index
        %22 = vector.load %arg5[%c0_20, %c0_21] : memref<1x128xf32, #tpu.memory_space<vmem>>, vector<1x128xf32>
        %23 = vector.broadcast %22 : vector<1x128xf32> to vector<2x128xf32>
        %24 = arith.addf %15, %23 : vector<2x128xf32>
        %c0_22 = arith.constant 0 : index
        %c0_23 = arith.constant 0 : index
        %25 = vector.load %arg6[%c0_22, %c0_23] : memref<2x128xf32, #tpu.memory_space<vmem>>, vector<2x128xf32>
        tpu.vector_store %arg6[%c0_22, %c0_23], %24 {strides = array<i32>} : memref<2x128xf32, #tpu.memory_space<vmem>>, vector<2x128xf32>,
      } else {
      }
      %c0_i32_18 = arith.constant 0 : i32
      %19 = arith.cmpi sgt, %arg1, %c0_i32_18 : i32
      %20 = arith.extui %19 : i1 to i32
      %c0_i32_19 = arith.constant 0 : i32
      %21 = arith.cmpi ne, %20, %c0_i32_19 : i32
      scf.if %21 {
        %c0_20 = arith.constant 0 : index
        %c0_21 = arith.constant 0 : index
        %22 = vector.load %arg6[%c0_20, %c0_21] : memref<2x128xf32, #tpu.memory_space<vmem>>, vector<2x128xf32>
        %23 = arith.addf %22, %15 : vector<2x128xf32>
        %c0_22 = arith.constant 0 : index
        %c0_23 = arith.constant 0 : index
        %24 = vector.load %arg6[%c0_22, %c0_23] : memref<2x128xf32, #tpu.memory_space<vmem>>, vector<2x128xf32>
        tpu.vector_store %arg6[%c0_22, %c0_23], %23 {strides = array<i32>} : memref<2x128xf32, #tpu.memory_space<vmem>>, vector<2x128xf32>,
      } else {
      }
    } else {
    }
    return
  }
  func.func @transform_0(%arg0: i32, %arg1: i32, %arg2: i32) -> (i32, i32, i32, i32) {
    %c0_i32 = arith.constant 0 : i32
    %c0_i32_0 = arith.constant 0 : i32
    return %arg1, %arg0, %arg2, %c0_i32 : i32, i32, i32, i32
  }
  func.func @transform_1(%arg0: i32, %arg1: i32, %arg2: i32) -> (i32, i32, i32) {
    %c0_i32 = arith.constant 0 : i32
    %c0_i32_0 = arith.constant 0 : i32
    %c0_i32_1 = arith.constant 0 : i32
    return %arg1, %c0_i32, %c0_i32_0 : i32, i32, i32
  }
  func.func @transform_2(%arg0: i32, %arg1: i32, %arg2: i32) -> (i32, i32) {
    %c0_i32 = arith.constant 0 : i32
    %c0_i32_0 = arith.constant 0 : i32
    %c0_i32_1 = arith.constant 0 : i32
    return %c0_i32, %c0_i32_0 : i32, i32
  }
  func.func @transform_3(%arg0: i32, %arg1: i32, %arg2: i32) -> (i32, i32) {
    %c0_i32 = arith.constant 0 : i32
    %c0_i32_0 = arith.constant 0 : i32
    return %arg0, %c0_i32 : i32, i32
  }
}

</mosaic_0001>

<llo_original>
// kernel: net_trans_forward.1
$region0: #{net_trans_forward.1}
  #allocation0 [shape = 'u32[]', space=smem, size = 0x4, offset = 0x4, fixed_abs, tag = 'smem constant byte address 0x4 - core index']
  #allocation1 [shape = 'u32[144,128]{1,0:T(1,128)}', space=vmem, size = 0x12000, scoped, tag = 'internal scratch']
  #allocation2 [shape = 'f32[2,32]{1,0:T(2,128)}', space=vmem, size = 0x400, scoped, tag = 'scratch operand']
  %s0 = inlined_call_operand.vmem [shape: f32[3,2,8,32], index: 0, kind: input, shape index: {}]
  %s1 = inlined_call_operand.vmem [shape: f32[3,32,128], index: 1, kind: input, shape index: {}]
  %s2 = inlined_call_operand.vmem [shape: f32[1,128], index: 2, kind: input, shape index: {}]
  %s3 = inlined_call_operand.hbm [shape: f32[2,128], index: 3, kind: output, shape index: {}]
  %s4 = sld [smem:[#allocation0]]
  $region61: #{net_trans_forward.1} parent=0
    _
  %s6 = ssub.s32 1, %s4
  %s7 = scalar_select 0, %s6, %s4
  $region1: #{net_trans_forward.1} parent=0
    #allocation3 [shape = 'u8[1024]{0}', space=vmem, size = 0x400, scoped, tag = 'output window, operand 0, single buffered']
    #allocation4 [shape = 's32[2]{0}', space=sflag, size = 0x8, scoped, tag = 'scoped memory for net_trans_forward.1']
    %8 = vsyncpa [#allocation4], 0
    loop: start=0, step=1, limit=5
    $region2: #{net_trans_forward.1} parent=1 // loop_pre_header
      _
    $region3: #{net_trans_forward.1} parent=1 // loop_header
      %s10 = sphi 0, %s14
      %p11 = scmp.ge.s32.totalorder %s10, 5
      %s17 = sphi 0, %s36
      %s18 = sphi 0, %s32
      %s19 = sphi 0, %s28
      %s20 = sphi 0, %s17
      %s21 = sphi 0, %s18
      %s22 = sphi 0, %s19
      %s23 = sphi 0, %s20
      %s24 = sphi 0, %s21
      %s25 = sphi 0, %s22
      %s43 = sphi 0, %s45
      %s46 = sphi 0, %s43
      %s47 = sphi 0, %s46
      %s63 = sphi 0, %s47
      %s69 = sphi 0, %s71
      %s72 = sphi 0, %s69
      %s73 = sphi 0, %s72
      %s89 = sphi 0, %s73
      %s93 = sphi 0, %s93
      %s95 = sphi 0, %s93
      %s96 = sphi 0, %s95
      %s110 = sphi 0, %s96
      %s116 = sphi 0, %s118
      %s119 = sphi 0, %s116
      %s120 = sphi 0, %s119
      %s136 = sphi 0, %s120
    $region4: #{net_trans_forward.1} parent=1 // loop_header_branch
      %13 = sbr.rel (%p11) target = $region8
    $region5: #{net_trans_forward.1} parent=1 // loop_body
      %s15 = ssub.s32 %s10, 1
      %s16 = ssub.s32 %s10, 2
      %s26 = sadd.s32 1, %s19
      %p27 = scmp.ge.s32.totalorder %s26, 1
      %s28 = scalar_select %p27, 0, %s26
      %s29 = sadd.s32 1, %s18
      %s30 = scalar_select %p27, %s29, %s18
      %p31 = scmp.ge.s32.totalorder %s30, 3
      %s32 = scalar_select %p31, 0, %s30
      %s33 = sadd.s32 1, %s17
      %s34 = scalar_select %p31, %s33, %s17
      %p35 = scmp.ge.s32.totalorder %s34, 1
      %s36 = scalar_select %p35, 0, %s34
      %s37 = ssub.s32 %s18, %s32
      %s38 = ssub.s32 %s17, %s36
      %s39 = sor.u32 %s37, %s38
      %s40 = ssub.s32 %s19, %s28
      %s41 = sor.u32 %s39, %s40
      %p42 = scmp.eq.s32.totalorder %s41, 0
      %s44 = sadd.s32 %s43, 1
      %s45 = scalar_select %p42, %s43, %s44
      %p48 = pneg %p42
      %p49 = scmp.eq.s32.totalorder %s10, 2
      %p50 = por %p48, %p49
      %p51 = scmp.ne.s32.totalorder %s43, %s46
      %p52 = scmp.eq.s32.totalorder %s10, 0
      %p53 = por %p51, %p52
      %p54 = scmp.ne.s32.totalorder %s43, %s46
      %p55 = scmp.eq.s32.totalorder %s15, 2
      %p56 = por %p54, %p55
      %p57 = scmp.ne.s32.totalorder %s46, %s47
      %p58 = scmp.eq.s32.totalorder %s15, 0
      %p59 = por %p57, %p58
      %p60 = scmp.ne.s32.totalorder %s46, %s47
      %p61 = scmp.eq.s32.totalorder %s16, 2
      %p62 = por %p60, %p61
      %p64 = scmp.ne.s32.totalorder %s47, %s63
      %p65 = scmp.eq.s32.totalorder %s16, 0
      %p66 = por %p64, %p65
      %s67 = ssub.s32 %s18, %s32
      %p68 = scmp.eq.s32.totalorder %s67, 0
      %s70 = sadd.s32 %s69, 1
      %s71 = scalar_select %p68, %s69, %s70
      %p74 = pneg %p68
      %p75 = scmp.eq.s32.totalorder %s10, 2
      %p76 = por %p74, %p75
      %p77 = scmp.ne.s32.totalorder %s69, %s72
      %p78 = scmp.eq.s32.totalorder %s10, 0
      %p79 = por %p77, %p78
      %p80 = scmp.ne.s32.totalorder %s69, %s72
      %p81 = scmp.eq.s32.totalorder %s15, 2
      %p82 = por %p80, %p81
      %p83 = scmp.ne.s32.totalorder %s72, %s73
      %p84 = scmp.eq.s32.totalorder %s15, 0
      %p85 = por %p83, %p84
      %p86 = scmp.ne.s32.totalorder %s72, %s73
      %p87 = scmp.eq.s32.totalorder %s16, 2
      %p88 = por %p86, %p87
      %p90 = scmp.ne.s32.totalorder %s73, %s89
      %p91 = scmp.eq.s32.totalorder %s16, 0
      %p92 = por %p90, %p91
      %s94 = sadd.s32 %s93, 1
      %p97 = scmp.eq.s32.totalorder %s10, 2
      %p98 = scmp.ne.s32.totalorder %s93, %s95
      %p99 = scmp.eq.s32.totalorder %s10, 0
      %p100 = por %p98, %p99
      %p101 = scmp.ne.s32.totalorder %s93, %s95
      %p102 = scmp.eq.s32.totalorder %s15, 2
      %p103 = por %p101, %p102
      %p104 = scmp.ne.s32.totalorder %s95, %s96
      %p105 = scmp.eq.s32.totalorder %s15, 0
      %p106 = por %p104, %p105
      %p107 = scmp.ne.s32.totalorder %s95, %s96
      %p108 = scmp.eq.s32.totalorder %s16, 2
      %p109 = por %p107, %p108
      %p111 = scmp.ne.s32.totalorder %s96, %s110
      %p112 = scmp.eq.s32.totalorder %s16, 0
      %p113 = por %p111, %p112
      %s114 = ssub.s32 %s17, %s36
      %p115 = scmp.eq.s32.totalorder %s114, 0
      %s117 = sadd.s32 %s116, 1
      %s118 = scalar_select %p115, %s116, %s117
      %p121 = pneg %p115
      %p122 = scmp.eq.s32.totalorder %s10, 2
      %p123 = por %p121, %p122
      %p124 = scmp.ne.s32.totalorder %s116, %s119
      %p125 = scmp.eq.s32.totalorder %s10, 0
      %p126 = por %p124, %p125
      %p127 = scmp.ne.s32.totalorder %s116, %s119
      %p128 = scmp.eq.s32.totalorder %s15, 2
      %p129 = por %p127, %p128
      %p130 = scmp.ne.s32.totalorder %s119, %s120
      %p131 = scmp.eq.s32.totalorder %s15, 0
      %p132 = por %p130, %p131
      %p133 = scmp.ne.s32.totalorder %s119, %s120
      %p134 = scmp.eq.s32.totalorder %s16, 2
      %p135 = por %p133, %p134
      %p137 = scmp.ne.s32.totalorder %s120, %s136
      %p138 = scmp.eq.s32.totalorder %s16, 0
      %p139 = por %p137, %p138
      %p140 = scmp.le.s32.totalorder 1, %s10
      %p141 = scmp.lt.s32.totalorder %s10, 4
      %p142 = pnand %p140, %p141
      %p143 = pneg %p142
      // Predicated region
      $region9: #{net_trans_forward.1} parent=5 // pred_check
        _
      $region10: #{net_trans_forward.1} parent=5 // pred_check_branch
        %145 = sbr.rel (%p142) target = $region12
      $region11: #{net_trans_forward.1} parent=5 // pred_region
        %s146 = ssub.s32 %s10, 1
        // Predicated region
        $region13: #{net_trans_forward.1} parent=11 // pred_check
          %p147 = pneg %p106
        $region14: #{net_trans_forward.1} parent=11 // pred_check_branch
          %149 = sbr.rel (%p147) target = $region16
        $region15: #{net_trans_forward.1} parent=11 // pred_region
          _
        $region16: #{net_trans_forward.1} parent=11 // pred_fallthru
          _
      $region12: #{net_trans_forward.1} parent=5 // pred_fallthru
        _
      %p150 = scmp.lt.s32.totalorder %s10, 3
      // Predicated region
      $region17: #{net_trans_forward.1} parent=5 // pred_check
        %p151 = pneg %p150
      $region18: #{net_trans_forward.1} parent=5 // pred_check_branch
        %153 = sbr.rel (%p151) target = $region20
      $region19: #{net_trans_forward.1} parent=5 // pred_region
        // Predicated region
        $region21: #{net_trans_forward.1} parent=19 // pred_check
          %p154 = pneg %p53
        $region22: #{net_trans_forward.1} parent=19 // pred_check_branch
          %156 = sbr.rel (%p154) target = $region24
        $region23: #{net_trans_forward.1} parent=19 // pred_region
          %s157 = smul.u32 2, %s17
          %p158 = scmp.lt.s32.totalorder %s18, 2
          %s159 = scalar_select %p158, %s18, 2
          %p160 = scmp.lt.s32.totalorder %s157, 1
          %s161 = scalar_select %p160, %s157, 1
          %p162 = scmp.lt.s32.totalorder %s19, 0
          %s163 = scalar_select %p162, %s19, 0
          %s164 = sadd.s32 %s163, %s161
          %s165 = smul.addr %s159, 2
          %s166 = sadd.s32 %s164, %s165
          %s167 = smul.addr %s166, 8
          %s168 = scalar_lea.vmem %s0, %s167
          %s169 = smul.u32 2, %s17
        $region24: #{net_trans_forward.1} parent=19 // pred_fallthru
          _
        // Predicated region
        $region25: #{net_trans_forward.1} parent=19 // pred_check
          %p170 = pneg %p79
        $region26: #{net_trans_forward.1} parent=19 // pred_check_branch
          %172 = sbr.rel (%p170) target = $region28
        $region27: #{net_trans_forward.1} parent=19 // pred_region
          %p173 = scmp.lt.s32.totalorder %s18, 2
          %s174 = scalar_select %p173, %s18, 2
          %s175 = smul.addr %s174, 4
          %s176 = smul.addr %s175, 8
          %s177 = scalar_lea.vmem %s1, %s176
        $region28: #{net_trans_forward.1} parent=19 // pred_fallthru
          _
      $region20: #{net_trans_forward.1} parent=5 // pred_fallthru
        _
      %p178 = scmp.le.s32.totalorder 1, %s10
      %p179 = scmp.lt.s32.totalorder %s10, 4
      %p180 = pnand %p178, %p179
      %p181 = pneg %p180
      // Predicated region
      $region29: #{net_trans_forward.1} parent=5 // pred_check
        _
      $region30: #{net_trans_forward.1} parent=5 // pred_check_branch
        %183 = sbr.rel (%p180) target = $region32
      $region31: #{net_trans_forward.1} parent=5 // pred_region
        %s184 = ssub.s32 %s10, 1
        %s185 = smul.u32 2, %s20
        %p186 = scmp.lt.s32.totalorder %s21, 2
        %s187 = scalar_select %p186, %s21, 2
        %p188 = scmp.lt.s32.totalorder %s185, 1
        %s189 = scalar_select %p188, %s185, 1
        %p190 = scmp.lt.s32.totalorder %s22, 0
        %s191 = scalar_select %p190, %s22, 0
        %s192 = sadd.s32 %s191, %s189
        %s193 = smul.addr %s187, 2
        %s194 = sadd.s32 %s192, %s193
        %s195 = smul.addr %s194, 8
        %s196 = scalar_lea.vmem %s0, %s195
        %p197 = pneg %p59
        %p198 = pneg %p56
        %p199 = scmp.lt.s32.totalorder %s21, 2
        %s200 = scalar_select %p199, %s21, 2
        %s201 = smul.addr %s200, 4
        %s202 = smul.addr %s201, 8
        %s203 = scalar_lea.vmem %s1, %s202
        %p204 = pneg %p85
        %p205 = pneg %p82
        %p206 = pneg %p106
        %p207 = pneg %p103
        %p208 = pneg %p132
        %p209 = pneg %p129
        %s210 = smul.u32 2, %s20
        %p211 = scmp.lt.s32.totalorder %s21, 2
        %s212 = scalar_select %p211, %s21, 2
        %p213 = scmp.lt.s32.totalorder %s210, 1
        %s214 = scalar_select %p213, %s210, 1
        %p215 = scmp.lt.s32.totalorder %s22, 0
        %s216 = scalar_select %p215, %s22, 0
        %s217 = sadd.s32 %s216, %s214
        %s218 = smul.addr %s212, 2
        %s219 = sadd.s32 %s217, %s218
        %s220 = smul.addr %s219, 8
        %s221 = scalar_lea.vmem %s0, %s220
        %s222 = smul.u32 2, %s20
        %p223 = scmp.lt.s32.totalorder %s21, 2
        %s224 = scalar_select %p223, %s21, 2
        %s225 = smul.addr %s224, 4
        %s226 = smul.addr %s225, 8
        %s227 = scalar_lea.vmem %s1, %s226
        %p228 = scmp.eq.s32.totalorder %s22, 0
        // Predicated region
        $region33: #{net_trans_forward.1} parent=31 // pred_check
          %p229 = pneg %p228
        $region34: #{net_trans_forward.1} parent=31 // pred_check_branch
          %231 = sbr.rel (%p229) target = $region36
        $region35: #{net_trans_forward.1} parent=31 // pred_region
          %vm232 = vcmask 254976
          %233 = vst.msk [vmem:[#allocation2] sm:$0x3] %vm232, -inf
        $region36: #{net_trans_forward.1} parent=31 // pred_fallthru
          _
        %v234 = vld [vmem:[#allocation2] sm:$0x3]
        %v235 = vld [vmem:[%s221] sm:$0xff]
        %v236 = vld [vmem:[%s221 + $0x8] sm:$0xff]
        %vm237 = vcmask 261120
        %v238 = vsel %vm237, %v235, -inf
        %v239 = vrot.slane %v238, 4
        %v240 = vmax.f32 %v238, %v239
        %v241 = vrot.slane %v240, 2
        %v242 = vmax.f32 %v240, %v241
        %v243 = vrot.slane %v242, 1
        %v244 = vmax.f32 %v242, %v243
        %v245 = vsel %vm237, %v236, -inf
        %v246 = vrot.slane %v245, 4
        %v247 = vmax.f32 %v245, %v246
        %v248 = vrot.slane %v247, 2
        %v249 = vmax.f32 %v247, %v248
        %v250 = vrot.slane %v249, 1
        %v251 = vmax.f32 %v249, %v250
        %vm254 = vcmask 1041409
        %v255 = vsel %vm254, %v251, %v244
        %v257 = vmax.f32 %v234, %v255
        %vm258 = vcmask 254976
        %259 = vst.msk [vmem:[#allocation2] sm:$0x3] %vm258, %v257
        // Predicated region
        $region37: #{net_trans_forward.1} parent=31 // pred_check
          %p260 = pneg %p228
        $region38: #{net_trans_forward.1} parent=31 // pred_check_branch
          %262 = sbr.rel (%p260) target = $region40
        $region39: #{net_trans_forward.1} parent=31 // pred_region
          %v263 = vld [vmem:[#allocation2] sm:$0x3]
          %v264 = vld [vmem:[%s227] sm:$0xff]
          %v265 = vld [vmem:[%s227 + $0x8] sm:$0xff]
          %v266 = vld [vmem:[%s227 + $0x10] sm:$0xff]
          %v267 = vld [vmem:[%s227 + $0x18] sm:$0xff]
          %v269 = vsel %vm237, %v263, 0
          %271 = vmatprep.subr.mxu0 0.0
          %272 = vmatpush1.msra.mxu0 0.0
          %273 = vmatprep.subr.mxu0 0.0
          %274 = vmatpush1.msra.mxu0 0.0
          %275 = vmatprep.subr.mxu0 0.0
          %276 = vmatpush1.msra.mxu0 0.0
          %277 = vmatprep.subr.mxu0 0.0
          %278 = vmatpush1.msra.mxu0 0.0
          %279 = vmatprep.subr.mxu0 0.0
          %280 = vmatpush1.msra.mxu0 0.0
          %281 = vmatprep.subr.mxu0 0.0
          %282 = vmatpush1.msra.mxu0 0.0
          %283 = vmatprep.subr.mxu0 0.0
          %284 = vmatpush1.msra.mxu0 0.0
          %285 = vmatprep.subr.mxu0 0.0
          %286 = vmatpush1.msra.mxu0 0.0
          %287 = vmatprep.subr.mxu0 0.0
          %288 = vmatpush1.msra.mxu0 0.0
          %289 = vmatprep.subr.mxu0 0.0
          %290 = vmatpush1.msra.mxu0 0.0
          %291 = vmatprep.subr.mxu0 0.0
          %292 = vmatpush1.msra.mxu0 0.0
          %293 = vmatprep.subr.mxu0 0.0
          %294 = vmatpush1.msra.mxu0 0.0
          %295 = vmatprep.subr.mxu0 0.0
          %296 = vmatpush1.msra.mxu0 %v267
          %297 = vmatprep.subr.mxu0 0.0
          %298 = vmatpush1.msra.mxu0 %v266
          %299 = vmatprep.subr.mxu0 0.0
          %300 = vmatpush1.msra.mxu0 %v265
          %301 = vmatprep.subr.mxu0 0.0
          %302 = vmatpush1.msra.mxu0 %v264
          %303 = vmatprep.subr.mxu0 0.0
          %304 = vmatpush2.msra.mxu0 0.0
          %305 = vmatprep.subr.mxu0 0.0
          %306 = vmatpush2.msra.mxu0 0.0
          %307 = vmatprep.subr.mxu0 0.0
          %308 = vmatpush2.msra.mxu0 0.0
          %309 = vmatprep.subr.mxu0 0.0
          %310 = vmatpush2.msra.mxu0 0.0
          %311 = vmatprep.subr.mxu0 0.0
          %312 = vmatpush2.msra.mxu0 0.0
          %313 = vmatprep.subr.mxu0 0.0
          %314 = vmatpush2.msra.mxu0 0.0
          %315 = vmatprep.subr.mxu0 0.0
          %316 = vmatpush2.msra.mxu0 0.0
          %317 = vmatprep.subr.mxu0 0.0
          %318 = vmatpush2.msra.mxu0 0.0
          %319 = vmatprep.subr.mxu0 0.0
          %320 = vmatpush2.msra.mxu0 0.0
          %321 = vmatprep.subr.mxu0 0.0
          %322 = vmatpush2.msra.mxu0 0.0
          %323 = vmatprep.subr.mxu0 0.0
          %324 = vmatpush2.msra.mxu0 0.0
          %325 = vmatprep.subr.mxu0 0.0
          %326 = vmatpush2.msra.mxu0 0.0
          %327 = vmatprep.subr.mxu0 0.0
          %328 = vmatpush2.msra.mxu0 0.0
          %329 = vmatprep.subr.mxu0 0.0
          %330 = vmatpush2.msra.mxu0 0.0
          %331 = vmatprep.subr.mxu0 0.0
          %332 = vmatpush2.msra.mxu0 0.0
          %333 = vmatprep.subr.mxu0 0.0
          %334 = vmatpush2.msra.mxu0 0.0
          %335 = vmatprep.mubr.f32.mxu0 0.0
          %336 = vmatmul.mubr.f32.gmra.mxu0 %v269
          %v337 = vpop.f32.mrf.mxu0
          %v338 = vadd.f32 0.0, %v337
          %v339 = vpop.f32.mrf.mxu0
          %340 = vdwg.mxu0
          %p341 = scmp.eq.s32.totalorder %s21, 0
          // Predicated region
          $region41: #{net_trans_forward.1} parent=39 // pred_check
            %p342 = pneg %p341
          $region42: #{net_trans_forward.1} parent=39 // pred_check_branch
            %344 = sbr.rel (%p342) target = $region44
          $region43: #{net_trans_forward.1} parent=39 // pred_region
            %v345 = vld [vmem:[%s2] sm:$0x1]
            %v347 = vlaneseq
            %v348 = vshrl.u32 %v347, 7
            %v349 = vsub.s32 0, %v348
            %v350 = vrot.slane %v345, %v349
            %v352 = vadd.f32 %v338, %v350
            %353 = vst [vmem:[#allocation3] sm:$0x3] %v352
          $region44: #{net_trans_forward.1} parent=39 // pred_fallthru
            _
          %p354 = scmp.gt.s32.totalorder %s21, 0
          // Predicated region
          $region45: #{net_trans_forward.1} parent=39 // pred_check
            %p355 = pneg %p354
          $region46: #{net_trans_forward.1} parent=39 // pred_check_branch
            %357 = sbr.rel (%p355) target = $region48
          $region47: #{net_trans_forward.1} parent=39 // pred_region
            %v358 = vld [vmem:[#allocation3] sm:$0x3]
            %v359 = vadd.f32 %v358, %v338
            %360 = vst [vmem:[#allocation3] sm:$0x3] %v359
          $region48: #{net_trans_forward.1} parent=39 // pred_fallthru
            _
        $region40: #{net_trans_forward.1} parent=31 // pred_fallthru
          _
        // Predicated region
        $region49: #{net_trans_forward.1} parent=31 // pred_check
          %p361 = pneg %p129
        $region50: #{net_trans_forward.1} parent=31 // pred_check_branch
          %363 = sbr.rel (%p361) target = $region52
        $region51: #{net_trans_forward.1} parent=31 // pred_region
          %s365 = ssub.s32 32, 32
          %366 = vsyncadd [#allocation4], %s365
          %s367 = smul.addr %s20, 32
          %s368 = scalar_lea.hbm %s3, %s367
          %s370 = sshll.u32 [#allocation3], 4
          %s371 = int_to_ptr.vmem [resolvable:$true] %s370
          %373 = dma.vmem_to_hbm [thread:$0]  %s371, 32, %s368, [#allocation4]
        $region52: #{net_trans_forward.1} parent=31 // pred_fallthru
          _
        // Predicated region
        $region53: #{net_trans_forward.1} parent=31 // pred_check
          %p374 = pneg %p129
        $region54: #{net_trans_forward.1} parent=31 // pred_check_branch
          %376 = sbr.rel (%p374) target = $region56
        $region55: #{net_trans_forward.1} parent=31 // pred_region
          %377 = dma.done [#allocation4], 32
        $region56: #{net_trans_forward.1} parent=31 // pred_fallthru
          _
      $region32: #{net_trans_forward.1} parent=5 // pred_fallthru
        _
      %p378 = scmp.le.s32.totalorder 2, %s10
      // Predicated region
      $region57: #{net_trans_forward.1} parent=5 // pred_check
        %p379 = pneg %p378
      $region58: #{net_trans_forward.1} parent=5 // pred_check_branch
        %381 = sbr.rel (%p379) target = $region60
      $region59: #{net_trans_forward.1} parent=5 // pred_region
        %s382 = ssub.s32 %s10, 2
      $region60: #{net_trans_forward.1} parent=5 // pred_fallthru
        _
    $region6: #{net_trans_forward.1} parent=1 // loop_footer
      %s14 = sadd.s32 1, %s10
    $region7: #{net_trans_forward.1} parent=1 // loop_footer_branch
      %9 = sbr.rel target = $region3
    $region8: #{net_trans_forward.1} parent=1 // loop_exit
      _
    %383 = vsyncpa [#allocation4], 1
    %s384 = scalar_lea.sflag [#allocation4], 1
    %385 = vsyncpa %s384, 1

</llo_original>
